<compile_context>
chip_gen: v7x
topology: tpu7x:2x2x1
jax: 0.10.0
libtpu: 0.0.40
codegen_flags: <defaults>
</compile_context>

<pallas_src>
import functools
import math

import jax
import jax.numpy as jnp
from jax.experimental import pallas as pl
from jax.experimental.pallas import tpu as pltpu


def _round_up(a, b):
    return ((a + b - 1) // b) * b


def _sincos_kernel(x_ref, wp_ref, o_ref):
    x = x_ref[...]                       # (tb, 1)  f32 rows
    w = wp_ref[0:1, :]                   # (1, P)   f32, already * 2*pi
    ph = wp_ref[1:2, :]                  # (1, P)   f32, 0 or pi/2
    # Single fused pass: FMA on the VPU + sin on the EUP, lane-dense store.
    o_ref[...] = jnp.sin(x * w + ph).astype(o_ref.dtype)


def _jnp_reference(x, weights):
    x2 = x[:, None].astype(jnp.float32)
    freqs = x2 * weights[None, :].astype(jnp.float32) * 2.0 * math.pi
    return jnp.concatenate([x2, jnp.sin(freqs), jnp.cos(freqs)], axis=-1)


def learned_sinusoidal_pos_emb(x, weights, *, tile_b=2048,
                               out_dtype=jnp.float32, min_pallas_batch=0):
    """x: (B,), weights: (half_dim,) -> (B, 1 + 2*half_dim).

    out_dtype=jnp.bfloat16 halves HBM writeback if the consumer accepts it.
    min_pallas_batch > 0 routes tiny batches to the plain jnp fusion
    (this op is pure launch overhead at small B).
    """
    assert x.ndim == 1 and weights.ndim == 1
    B = x.shape[0]
    H = weights.shape[0]
    D2 = 2 * H                                        # sin/cos slab width

    if B < min_pallas_batch:
        return _jnp_reference(x, weights).astype(out_dtype)

    P = _round_up(D2, 128)                            # lane-dense padded width

    # ---- resident constants: one (2, P) buffer, 2*pi folded in once ---------
    w32 = weights.astype(jnp.float32) * (2.0 * math.pi)
    w_row = jnp.pad(jnp.concatenate([w32, w32]), (0, P - D2))
    ph_row = jnp.pad(
        jnp.concatenate([jnp.zeros((H,), jnp.float32),
                         jnp.full((H,), math.pi / 2.0, jnp.float32)]),
        (0, P - D2))
    wp = jnp.stack([w_row, ph_row], axis=0)           # (2, P)

    # ---- tile B: multiple of 8 sublanes; keep the grid >= ~8 steps ----------
    n_rows = _round_up(B, 8)
    tb = min(_round_up(tile_b, 8), n_rows)
    if pl.cdiv(n_rows, tb) < 8:
        tb = max(min(tb, _round_up(pl.cdiv(n_rows, 8), 8)),
                 min(256, n_rows))
    tb = _round_up(tb, 8)
    b_pad = _round_up(B, tb)
    grid = (b_pad // tb,)

    x2 = jnp.pad(x.astype(jnp.float32)[:, None], ((0, b_pad - B), (0, 0)))

    out_itemsize = jnp.dtype(out_dtype).itemsize
    # Real VMEM footprint: 2 output bufs + 2 x bufs ((tb,1) tiles to tb*512 B)
    # + constants (sublane-padded to 8 rows), plus headroom for Mosaic scratch.
    vmem_needed = (2 * tb * P * out_itemsize) + (2 * tb * 512) + (2 * 8 * P * 4)
    vmem_limit = int(min(max(2 * vmem_needed + (2 << 20), 8 << 20), 48 << 20))

    cost = pl.CostEstimate(
        flops=int(2 * b_pad * P),
        transcendentals=int(b_pad * P),
        bytes_accessed=int(4 * b_pad + 8 * P + b_pad * P * out_itemsize),
    )

    out_padded = pl.pallas_call(
        _sincos_kernel,
        out_shape=jax.ShapeDtypeStruct((b_pad, P), out_dtype),
        grid_spec=pltpu.PrefetchScalarGridSpec(
            num_scalar_prefetch=0,
            grid=grid,
            in_specs=[
                pl.BlockSpec((tb, 1), lambda i: (i, 0)),   # x rows, pipelined
                pl.BlockSpec((2, P), lambda i: (0, 0)),    # constants, resident
            ],
            out_specs=pl.BlockSpec((tb, P), lambda i: (i, 0)),
        ),
        compiler_params=pltpu.CompilerParams(
            dimension_semantics=("parallel",),             # megacore shard
            vmem_limit_bytes=vmem_limit,
        ),
        cost_estimate=cost,
    )(x2, wp)

    sincos = out_padded[:B, :D2]
    x_col = x.astype(out_dtype)[:, None]
    return jnp.concatenate([x_col, sincos], axis=-1)


if __name__ == "__main__":
    dim = 32                       # must be even; half_dim = 16
    half_dim = dim // 2
    batch = 8

    key = jax.random.PRNGKey(0)
    kx, kw = jax.random.split(key)
    x = jax.random.normal(kx, (batch,), dtype=jnp.float32)
    weights = jax.random.normal(kw, (half_dim,), dtype=jnp.float32)

    # Jit the wrapper so the tiny constant-setup / pad ops fuse with the call.
    emb = jax.jit(functools.partial(learned_sinusoidal_pos_emb,
                                    tile_b=2048, out_dtype=jnp.float32,
                                    min_pallas_batch=0))
    out = jax.block_until_ready(emb(x, weights))

    ref = _jnp_reference(x, weights)
    assert out.shape == (batch, dim + 1), out.shape
    assert jnp.allclose(out, ref, atol=1e-5, rtol=1e-5), "mismatch vs reference"
    print("KERNEL_OK")
</pallas_src>

<mosaic_0001>
module attributes {stable_mosaic.version = 11 : i64} {
  func.func @_sincos_kernel(%arg0: i32, %arg1: memref<8x1xf32, #tpu.memory_space<vmem>>, %arg2: memref<2x128xf32, #tpu.memory_space<vmem>>, %arg3: memref<8x128xf32, #tpu.memory_space<vmem>>) attributes {dimension_semantics = [#tpu.dimension_semantics<parallel>], iteration_bounds = array<i64: 1>, scalar_prefetch = 0 : i64, scratch_operands = 0 : i64, tpu.core_type = #tpu.core_type<tc>, window_params = [{transform_indices = @transform_0, window_bounds = array<i64: 8, 1>}, {pipeline_mode = #tpu.pipeline_mode<synchronous>, transform_indices = @transform_1, window_bounds = array<i64: 2, 128>}, {transform_indices = @transform_2, window_bounds = array<i64: 8, 128>}]} {
    %c0 = arith.constant 0 : index
    %c0_0 = arith.constant 0 : index
    %0 = vector.load %arg1[%c0, %c0_0] : memref<8x1xf32, #tpu.memory_space<vmem>>, vector<8x1xf32>
    %c0_1 = arith.constant 0 : index
    %c0_2 = arith.constant 0 : index
    %1 = vector.load %arg2[%c0_1, %c0_2] : memref<2x128xf32, #tpu.memory_space<vmem>>, vector<1x128xf32>
    %c1 = arith.constant 1 : index
    %c0_3 = arith.constant 0 : index
    %2 = vector.load %arg2[%c1, %c0_3] : memref<2x128xf32, #tpu.memory_space<vmem>>, vector<1x128xf32>
    %3 = vector.broadcast %0 : vector<8x1xf32> to vector<8x128xf32>
    %4 = vector.broadcast %1 : vector<1x128xf32> to vector<8x128xf32>
    %5 = arith.mulf %3, %4 : vector<8x128xf32>
    %6 = vector.broadcast %2 : vector<1x128xf32> to vector<8x128xf32>
    %7 = arith.addf %5, %6 : vector<8x128xf32>
    %8 = math.sin %7 : vector<8x128xf32>
    %c0_4 = arith.constant 0 : index
    %c0_5 = arith.constant 0 : index
    %9 = vector.load %arg3[%c0_4, %c0_5] : memref<8x128xf32, #tpu.memory_space<vmem>>, vector<8x128xf32>
    tpu.vector_store %arg3[%c0_4, %c0_5], %8 {strides = array<i32>} : memref<8x128xf32, #tpu.memory_space<vmem>>, vector<8x128xf32>,
    return
  }
  func.func @transform_0(%arg0: i32) -> (i32, i32) {
    %c0_i32 = arith.constant 0 : i32
    %c0_i32_0 = arith.constant 0 : i32
    return %arg0, %c0_i32 : i32, i32
  }
  func.func @transform_1(%arg0: i32) -> (i32, i32) {
    %c0_i32 = arith.constant 0 : i32
    %c0_i32_0 = arith.constant 0 : i32
    %c0_i32_1 = arith.constant 0 : i32
    return %c0_i32, %c0_i32_0 : i32, i32
  }
  func.func @transform_2(%arg0: i32) -> (i32, i32) {
    %c0_i32 = arith.constant 0 : i32
    %c0_i32_0 = arith.constant 0 : i32
    return %arg0, %c0_i32 : i32, i32
  }
}

</mosaic_0001>

<llo_original>
// kernel: learned_sinusoidal_pos_emb.1
$region0: #{learned_sinusoidal_pos_emb.1}
  #allocation0 [shape = 'u32[]', space=smem, size = 0x4, offset = 0x4, fixed_abs, tag = 'smem constant byte address 0x4 - core index']
  #allocation1 [shape = 'u32[144,128]{1,0:T(1,128)}', space=vmem, size = 0x12000, scoped, tag = 'internal scratch']
  %s0 = inlined_call_operand.vmem [shape: f32[8,1], index: 0, kind: input, shape index: {}]
  %s1 = inlined_call_operand.vmem [shape: f32[2,128], index: 1, kind: input, shape index: {}]
  %s2 = inlined_call_operand.vmem [shape: f32[8,128], index: 2, kind: output, shape index: {}]
  %s3 = sld [smem:[#allocation0]]
  $region18: #{learned_sinusoidal_pos_emb.1} parent=0
    _
  %s5 = ssub.s32 1, %s3
  %s6 = scalar_select 0, %s5, %s3
  // Predicated region
  $region2: #{learned_sinusoidal_pos_emb.1} parent=0 // pred_check
    _
  $region3: #{learned_sinusoidal_pos_emb.1} parent=0 // pred_check_branch
    %8 = sbr.rel (0) target = $region5
  $region4: #{learned_sinusoidal_pos_emb.1} parent=0 // pred_region
    _
  $region5: #{learned_sinusoidal_pos_emb.1} parent=0 // pred_fallthru
    _
  // Predicated region
  $region6: #{learned_sinusoidal_pos_emb.1} parent=0 // pred_check
    _
  $region7: #{learned_sinusoidal_pos_emb.1} parent=0 // pred_check_branch
    %10 = sbr.rel (0) target = $region9
  $region8: #{learned_sinusoidal_pos_emb.1} parent=0 // pred_region
    _
  $region9: #{learned_sinusoidal_pos_emb.1} parent=0 // pred_fallthru
    _
  %v11 = vld [vmem:[%s0] sm:$0xff]
  %v12 = vld [vmem:[%s1] sm:$0x1]
  %v13 = vld [vmem:[%s1 + $0x1] sm:$0x1]
  %15 = vset.pattern.permute.xlu0 0
  %16 = vperm.xlu0 %15, %v11
  %v17 = vpop.permute.xlu0 %16
  %v19 = vlaneseq
  %v20 = vshrl.u32 %v19, 7
  %v21 = vsub.s32 0, %v20
  %v22 = vrot.slane %v12, %v21
  %v23 = vmul.f32 %v17, %v22
  %v24 = vlaneseq
  %v25 = vshrl.u32 %v24, 7
  %v26 = vsub.s32 0, %v25
  %v27 = vrot.slane %v13, %v26
  %v28 = vadd.f32 %v23, %v27
  %v29 = vand.u32 2147483647, %v28
  %vm30 = vcmp.le.f32.partialorder %v29, 0.7853982
  %vm31 = vcmp.lt.s32.totalorder %v28, 0
  %v32 = vand.u32 %v28, 2139095040
  %v33 = vshrl.u32 %v32, 23
  %v34 = vsub.s32 %v33, 127
  %v35 = vand.u32 2147483647, %v28
  %v36 = vand.u32 %v35, 8388607
  %v37 = vor.u32 %v36, 8388608
  %v38 = vsub.s32 0, %v37
  %v39 = vadd.s32 %v34, 1
  %vm40 = vcmp.gt.s32.totalorder %v39, 0
  %v41 = vsel %vm40, %v39, 0
  %v42 = vshrl.u32 %v41, 5
  %v43 = vand.u32 %v41, 31
  %v44 = vsub.s32 32, %v43
  %v45 = vshrl.u32 683565275, %v44
  %v46 = vshll.u32 683565275, %v43
  %v47 = vshrl.u32 2475754826, %v44
  %v48 = vor.u32 %v46, %v47
  %v49 = vshll.u32 2475754826, %v43
  %v50 = vshrl.u32 2131351028, %v44
  %v51 = vor.u32 %v49, %v50
  %v52 = vshll.u32 2131351028, %v43
  %v53 = vshrl.u32 2102212464, %v44
  %v54 = vor.u32 %v52, %v53
  %v55 = vshll.u32 2102212464, %v43
  %v56 = vshrl.u32 920167782, %v44
  %v57 = vor.u32 %v55, %v56
  %v58 = vshll.u32 920167782, %v43
  %v59 = vshrl.u32 1326507024, %v44
  %v60 = vor.u32 %v58, %v59
  %vm61 = vcmp.lt.s32.totalorder %v42, 1
  %vm62 = vcmp.lt.s32.totalorder %v42, 2
  %vm63 = vcmp.lt.s32.totalorder %v42, 3
  %vm64 = vcmp.lt.s32.totalorder %v42, 4
  %v65 = vsel %vm61, %v45, %v48
  %v66 = vsel %vm64, %v54, 2102212464
  %v67 = vsel %vm63, %v51, %v66
  %v68 = vsel %vm62, %v65, %v67
  %v69 = vsel %vm61, %v48, %v51
  %v70 = vsel %vm64, %v57, 920167782
  %v71 = vsel %vm63, %v54, %v70
  %v72 = vsel %vm62, %v69, %v71
  %v73 = vsel %vm61, %v51, %v54
  %v74 = vsel %vm64, %v60, 1326507024
  %v75 = vsel %vm63, %v57, %v74
  %v76 = vsel %vm62, %v73, %v75
  %v77 = vshll.u32 %v37, 8
  %v78 = vmul.u32.u64.compose %v77, %v76
  %v79 = vextract.low.u32 %v78
  %v80 = vextract.high.u32 %v78
  %v81 = vmul.u32.u64.compose %v77, %v72
  %v82 = vextract.low.u32 %v81
  %v83 = vextract.high.u32 %v81
  %v84 = vmul.u32 %v77, %v68
  %v85 = vadd.s32 %v80, %v82
  %vm86 = vc.u32 %v80, %v82
  %v87 = vadd.s32 %v83, 1
  %v88 = vsel %vm86, %v87, %v83
  %v89 = vadd.s32 %v84, %v88
  %v90 = vadd.s32 %v89, 536870912
  %v91 = vshrl.u32 %v90, 30
  %v92 = vshll.u32 %v91, 30
  %v93 = vsub.s32 %v89, %v92
  %vm94 = vcmp.lt.s32.totalorder %v93, 0
  %v95 = vsub.s32 0, %v93
  %v96 = vsel %vm94, %v95, %v93
  %v97 = vclz %v96
  %v98 = vsub.s32 %v97, 2
  %vm99 = vcmp.gt.s32.totalorder 0, %v98
  %v100 = vsel %vm99, 0, %v98
  %v101 = vsub.s32 32, %v100
  %v102 = vshll.u32 %v93, %v100
  %v103 = vshrl.u32 %v85, %v101
  %v104 = vor.u32 %v102, %v103
  %v105 = vsub.s32 4294967266, %v100
  %v106 = vadd.s32 %v105, 127
  %v107 = vshll.u32 %v106, 23
  %v108 = vor.u32 4788187, %v107
  %v109 = vand.u32 2147483647, %v108
  %v111 = vcvt.s32.f32 %v104
  %v112 = vmul.f32 %v111, %v109
  %v113 = vxor.u32 %v112, 2147483648
  %v114 = vsel %vm31, %v113, %v112
  %v115 = vsub.s32 4, %v91
  %v116 = vsel %vm31, %v115, %v91
  %v117 = vsel %vm30, %v28, %v114
  %v118 = vsel %vm30, 0, %v116
  %v119 = vcosq.f32.pop %v117
  %v120 = vsinq.f32.pop %v117
  %vm121 = vweird.f32 %v28
  %v122 = vadd.s32 %v118, 3
  %v123 = vand.u32 %v122, 3
  %vm124 = vcmp.lt.s32.totalorder %v123, 2
  %vm125 = vcmp.eq.s32.totalorder %v123, 0
  %v126 = vxor.u32 %v120, 2147483648
  %v127 = vsel %vm125, %v119, %v126
  %vm128 = vcmp.eq.s32.totalorder %v123, 2
  %v129 = vxor.u32 %v119, 2147483648
  %v130 = vsel %vm128, %v129, %v120
  %v131 = vsel %vm124, %v127, %v130
  %v132 = vsel %vm121, nan, %v131
  %133 = vst [vmem:[%s2] sm:$0xff] %v132
  // Predicated region
  $region10: #{learned_sinusoidal_pos_emb.1} parent=0 // pred_check
    _
  $region11: #{learned_sinusoidal_pos_emb.1} parent=0 // pred_check_branch
    %135 = sbr.rel (0) target = $region13
  $region12: #{learned_sinusoidal_pos_emb.1} parent=0 // pred_region
    _
  $region13: #{learned_sinusoidal_pos_emb.1} parent=0 // pred_fallthru
    _
  // Predicated region
  $region14: #{learned_sinusoidal_pos_emb.1} parent=0 // pred_check
    _
  $region15: #{learned_sinusoidal_pos_emb.1} parent=0 // pred_check_branch
    %137 = sbr.rel (0) target = $region17
  $region16: #{learned_sinusoidal_pos_emb.1} parent=0 // pred_region
    _
  $region17: #{learned_sinusoidal_pos_emb.1} parent=0 // pred_fallthru
    _

</llo_original>
